<compile_context>
chip_gen: v7x
topology: tpu7x:2x2x1
jax: 0.10.0
libtpu: 0.0.40
codegen_flags: <defaults>
</compile_context>

<pallas_src>
import functools

import jax
import jax.numpy as jnp
from jax import lax
from jax.experimental import pallas as pl
from jax.experimental.pallas import tpu as pltpu


# ---------------- static model config (mirrors the PyTorch params dict) -----
PARAMS = dict(
    x_dim=16,
    d_dim=32,
    d_layers=2,
    leaky_relu=True,      # presence of key -> F.leaky_relu
    layer_norm=True,
    loss_type="bce",      # anything != 'wasserstein' -> sigmoid head
)
LN_EPS = 1e-5
NEG_SLOPE = 0.01          # torch F.leaky_relu default


def _activ(x, leaky):
    if leaky:
        # max(x, 0.01*x) == leaky_relu(x) for 0 < slope < 1 (2 VPU ops vs 3).
        return jnp.maximum(x, NEG_SLOPE * x)
    return jnp.maximum(x, 0.0)


def _round_up(v, m):
    return ((v + m - 1) // m) * m


# ----------------------------- Pallas kernel --------------------------------
def _disc_kernel(d_layers, layer_norm, wasserstein, leaky,
                 x_ref, w1_ref, b1_ref, wl_ref, bl_ref, lnw_ref, lnb_ref,
                 w3_ref, b3_ref, o_ref):
    # Feature-major layout: activations are [d_dim, tile_b] (batch on lanes).
    #
    # x_ref:   (tile_b, x_dim)     f32
    # w1_ref:  (d_dim, x_dim)      torch layout [out, in]
    # b1_ref:  (d_dim, 1)
    # wl_ref:  (L, d_dim, d_dim)   torch layout [out, in]
    # bl_ref:  (L, d_dim, 1)
    # lnw_ref: (L, d_dim, 1)
    # lnb_ref: (L, d_dim, 1)
    # w3_ref:  (d_dim, 1)          used on the VPU, not the MXU
    # b3_ref:  (1, 1)
    # o_ref:   (1, tile_b)         lane-dense output row

    # Layer 1: h = activ(W1 @ x^T + b1) -> (d_dim, tile_b), f32 accumulation.
    h = lax.dot_general(
        w1_ref[...], x_ref[...],
        dimension_numbers=(((1,), (1,)), ((), ())),
        preferred_element_type=jnp.float32) + b1_ref[...]
    h = _activ(h, leaky)

    for l in range(d_layers):      # static python loop (d_layers is small)
        z = jnp.dot(wl_ref[l], h, preferred_element_type=jnp.float32) + bl_ref[l]
        if layer_norm:
            # LayerNorm over features == sublane axis (axis 0), per-lane.
            # Single-pass stats: var = E[z^2] - mu^2 ; (z - mu) computed once.
            mu = jnp.mean(z, axis=0, keepdims=True)
            mean_sq = jnp.mean(z * z, axis=0, keepdims=True)
            var = mean_sq - mu * mu
            zc = z - mu
            z = zc * lax.rsqrt(var + LN_EPS) * lnw_ref[l] + lnb_ref[l]
        h = _activ(z, leaky)

    # Head: N=1 matmul replaced with VPU multiply + sublane reduction.
    logits = jnp.sum(h * w3_ref[...], axis=0, keepdims=True) + b3_ref[...]
    out = logits if wasserstein else jax.nn.sigmoid(logits)
    o_ref[...] = out.astype(o_ref.dtype)


# ------------------------------ wrapper --------------------------------------
def discriminator_pallas(x, weights, params, *, tile_b=None):
    """x: (B, x_dim) f32.  weights in torch layout (see init_weights)."""
    w1, b1, wl, bl, lnw, lnb, w3, b3 = weights
    B, x_dim = x.shape
    d_dim = int(params["d_dim"])
    L = int(params["d_layers"])
    assert L >= 1

    # Tile selection:
    #  * large tiles (<= 8192 rows) to amortize ~0.35 us per grid step,
    #  * for B > 128 keep n_tiles >= 2 so v7x's two TensorCores both get work,
    #  * never larger than the (128-rounded) batch itself.
    if tile_b is None:
        tile_b = min(8192, _round_up(B, 128))
        if B > 128:
            tile_b = min(tile_b, _round_up(pl.cdiv(B, 2), 128))
    tile_b = max(128, _round_up(tile_b, 128))
    tile_b = min(tile_b, _round_up(B, 128))
    n_tiles = pl.cdiv(B, tile_b)

    f32 = jnp.float32
    ins = (
        x.astype(f32),                              # (B, x_dim) — no pad pass
        w1.astype(f32),                             # (d_dim, x_dim)
        b1.reshape(d_dim, 1).astype(f32),
        wl.astype(f32),                             # (L, d_dim, d_dim)
        bl.reshape(L, d_dim, 1).astype(f32),
        lnw.reshape(L, d_dim, 1).astype(f32),
        lnb.reshape(L, d_dim, 1).astype(f32),
        w3.reshape(d_dim, 1).astype(f32),
        b3.reshape(1, 1).astype(f32),
    )

    def const_spec(a):
        nd = a.ndim
        return pl.BlockSpec(a.shape, lambda i, nd=nd: (0,) * nd)

    kern = functools.partial(
        _disc_kernel, L, bool(params["layer_norm"]),
        params["loss_type"] == "wasserstein",
        "leaky_relu" in params)

    out = pl.pallas_call(
        kern,
        out_shape=jax.ShapeDtypeStruct((1, B), f32),
        grid_spec=pltpu.PrefetchScalarGridSpec(
            num_scalar_prefetch=0,
            grid=(n_tiles,),
            in_specs=[pl.BlockSpec((tile_b, x_dim), lambda i: (i, 0))]
                    + [const_spec(a) for a in ins[1:]],
            out_specs=pl.BlockSpec((1, tile_b), lambda i: (0, i)),
        ),
        compiler_params=pltpu.CompilerParams(
            dimension_semantics=("parallel",),
            vmem_limit_bytes=32 * 1024 * 1024),
    )(*ins)

    # (1, B) lane-dense row -> (B, 1)
    return out.reshape(B, 1)


# ----------------------- deterministic parameter init ------------------------
def init_weights(key, params):
    """Weights in torch nn.Linear layout: W[out, in], b[out]."""
    x_dim, d_dim, L = params["x_dim"], params["d_dim"], params["d_layers"]
    ks = jax.random.split(key, 6)
    s1 = 1.0 / (x_dim ** 0.5)
    sd = 1.0 / (d_dim ** 0.5)
    w1 = jax.random.uniform(ks[0], (d_dim, x_dim), jnp.float32, -s1, s1)
    b1 = jax.random.uniform(ks[1], (d_dim,), jnp.float32, -s1, s1)
    wl = jax.random.uniform(ks[2], (L, d_dim, d_dim), jnp.float32, -sd, sd)
    bl = jax.random.uniform(ks[3], (L, d_dim), jnp.float32, -sd, sd)
    lnw = jnp.ones((L, d_dim), jnp.float32)     # nn.LayerNorm init
    lnb = jnp.zeros((L, d_dim), jnp.float32)
    w3 = jax.random.uniform(ks[4], (1, d_dim), jnp.float32, -sd, sd)
    b3 = jax.random.uniform(ks[5], (1,), jnp.float32, -sd, sd)
    return (w1, b1, wl, bl, lnw, lnb, w3, b3)


# ----------------------------- pure-JAX reference ----------------------------
def discriminator_ref(x, weights, params):
    w1, b1, wl, bl, lnw, lnb, w3, b3 = weights
    leaky = "leaky_relu" in params
    h = _activ(x @ w1.T + b1, leaky)
    for l in range(params["d_layers"]):
        z = h @ wl[l].T + bl[l]
        if params["layer_norm"]:
            mu = jnp.mean(z, axis=-1, keepdims=True)
            var = jnp.mean((z - mu) ** 2, axis=-1, keepdims=True)
            z = (z - mu) * lax.rsqrt(var + LN_EPS) * lnw[l] + lnb[l]
        h = _activ(z, leaky)
    logits = h @ w3.T + b3
    if params["loss_type"] == "wasserstein":
        return logits
    return jax.nn.sigmoid(logits)


if __name__ == "__main__":
    key = jax.random.PRNGKey(0)
    kx1, kw, kx2 = jax.random.split(key, 3)

    weights = init_weights(kw, PARAMS)

    # --- check 1: tiny batch (single partial block, tail masking path) -------
    B1 = 16
    x1 = jax.random.normal(kx1, (B1, PARAMS["x_dim"]), jnp.float32)
    out1 = jax.block_until_ready(discriminator_pallas(x1, weights, PARAMS))
    ref1 = discriminator_ref(x1, weights, PARAMS)
    assert out1.shape == (B1, 1)
    assert jnp.allclose(out1, ref1, atol=1e-4, rtol=1e-4), (out1, ref1)

    # --- check 2: multi-tile grid with a partial last tile (tile_b=128) ------
    B2 = 300
    x2 = jax.random.normal(kx2, (B2, PARAMS["x_dim"]), jnp.float32)
    out2 = jax.block_until_ready(
        discriminator_pallas(x2, weights, PARAMS, tile_b=128))
    ref2 = discriminator_ref(x2, weights, PARAMS)
    assert out2.shape == (B2, 1)
    assert jnp.allclose(out2, ref2, atol=1e-4, rtol=1e-4), (out2, ref2)

    # --- check 3: default tile selection (n_tiles >= 2 for B > 128) ----------
    out3 = jax.block_until_ready(discriminator_pallas(x2, weights, PARAMS))
    assert out3.shape == (B2, 1)
    assert jnp.allclose(out3, ref2, atol=1e-4, rtol=1e-4), (out3, ref2)

    print("KERNEL_OK")
</pallas_src>

<mosaic_0001>
module attributes {stable_mosaic.version = 11 : i64} {
  func.func @_disc_kernel(%arg0: i32, %arg1: memref<128x16xf32, #tpu.memory_space<vmem>>, %arg2: memref<32x16xf32, #tpu.memory_space<vmem>>, %arg3: memref<32x1xf32, #tpu.memory_space<vmem>>, %arg4: memref<2x32x32xf32, #tpu.memory_space<vmem>>, %arg5: memref<2x32x1xf32, #tpu.memory_space<vmem>>, %arg6: memref<2x32x1xf32, #tpu.memory_space<vmem>>, %arg7: memref<2x32x1xf32, #tpu.memory_space<vmem>>, %arg8: memref<32x1xf32, #tpu.memory_space<vmem>>, %arg9: memref<1x1xf32, #tpu.memory_space<vmem>>, %arg10: memref<1x128xf32, #tpu.memory_space<vmem>>) attributes {dimension_semantics = [#tpu.dimension_semantics<parallel>], iteration_bounds = array<i64: 1>, scalar_prefetch = 0 : i64, scratch_operands = 0 : i64, tpu.core_type = #tpu.core_type<tc>, window_params = [{transform_indices = @transform_0, window_bounds = array<i64: 128, 16>}, {pipeline_mode = #tpu.pipeline_mode<synchronous>, transform_indices = @transform_1, window_bounds = array<i64: 32, 16>}, {pipeline_mode = #tpu.pipeline_mode<synchronous>, transform_indices = @transform_2, window_bounds = array<i64: 32, 1>}, {pipeline_mode = #tpu.pipeline_mode<synchronous>, transform_indices = @transform_3, window_bounds = array<i64: 2, 32, 32>}, {pipeline_mode = #tpu.pipeline_mode<synchronous>, transform_indices = @transform_4, window_bounds = array<i64: 2, 32, 1>}, {pipeline_mode = #tpu.pipeline_mode<synchronous>, transform_indices = @transform_5, window_bounds = array<i64: 2, 32, 1>}, {pipeline_mode = #tpu.pipeline_mode<synchronous>, transform_indices = @transform_6, window_bounds = array<i64: 2, 32, 1>}, {pipeline_mode = #tpu.pipeline_mode<synchronous>, transform_indices = @transform_7, window_bounds = array<i64: 32, 1>}, {pipeline_mode = #tpu.pipeline_mode<synchronous>, transform_indices = @transform_8, window_bounds = array<i64: 1, 1>}, {transform_indices = @transform_9, window_bounds = array<i64: 1, 128>}]} {
    %c0 = arith.constant 0 : index
    %c0_0 = arith.constant 0 : index
    %0 = vector.load %arg2[%c0, %c0_0] : memref<32x16xf32, #tpu.memory_space<vmem>>, vector<32x16xf32>
    %c0_1 = arith.constant 0 : index
    %c0_2 = arith.constant 0 : index
    %1 = vector.load %arg1[%c0_1, %c0_2] : memref<128x16xf32, #tpu.memory_space<vmem>>, vector<128x16xf32>
    %cst = arith.constant dense<0.000000e+00> : vector<32x128xf32>
    %2 = tpu.matmul %0, %1, %cst {dimension_numbers = #tpu.dot_dimension_numbers<[1], [1], [0], [0], [0, 0, 1, 0], [], []>} : vector<32x16xf32>, vector<128x16xf32>, vector<32x128xf32> -> vector<32x128xf32>
    %c0_3 = arith.constant 0 : index
    %c0_4 = arith.constant 0 : index
    %3 = vector.load %arg3[%c0_3, %c0_4] : memref<32x1xf32, #tpu.memory_space<vmem>>, vector<32x1xf32>
    %4 = vector.broadcast %3 : vector<32x1xf32> to vector<32x128xf32>
    %5 = arith.addf %2, %4 : vector<32x128xf32>
    %cst_5 = arith.constant 0.00999999977 : f32
    %6 = vector.broadcast %cst_5 : f32 to vector<32x128xf32>
    %7 = arith.mulf %6, %5 : vector<32x128xf32>
    %8 = arith.maximumf %5, %7 : vector<32x128xf32>
    %c0_6 = arith.constant 0 : index
    %c0_7 = arith.constant 0 : index
    %c0_8 = arith.constant 0 : index
    %9 = vector.load %arg4[%c0_6, %c0_7, %c0_8] : memref<2x32x32xf32, #tpu.memory_space<vmem>>, vector<1x32x32xf32>
    %10 = vector.shape_cast %9 : vector<1x32x32xf32> to vector<32x32xf32>
    %cst_9 = arith.constant dense<0.000000e+00> : vector<32x128xf32>
    %11 = tpu.matmul %10, %8, %cst_9 {dimension_numbers = #tpu.dot_dimension_numbers<[1], [0], [0], [1], [0, 0, 1, 1], [], []>} : vector<32x32xf32>, vector<32x128xf32>, vector<32x128xf32> -> vector<32x128xf32>
    %c0_10 = arith.constant 0 : index
    %c0_11 = arith.constant 0 : index
    %c0_12 = arith.constant 0 : index
    %12 = vector.load %arg5[%c0_10, %c0_11, %c0_12] : memref<2x32x1xf32, #tpu.memory_space<vmem>>, vector<1x32x1xf32>
    %13 = vector.shape_cast %12 : vector<1x32x1xf32> to vector<32x1xf32>
    %14 = vector.broadcast %13 : vector<32x1xf32> to vector<32x128xf32>
    %15 = arith.addf %11, %14 : vector<32x128xf32>
    %cst_13 = arith.constant dense<0.000000e+00> : vector<128xf32>
    %16 = vector.multi_reduction <add>, %15, %cst_13 [0] : vector<32x128xf32> to vector<128xf32>
    %17 = vector.shape_cast %16 : vector<128xf32> to vector<1x128xf32>
    %cst_14 = arith.constant 3.200000e+01 : f32
    %18 = vector.broadcast %cst_14 : f32 to vector<1x128xf32>
    %19 = arith.divf %17, %18 : vector<1x128xf32>
    %20 = arith.mulf %15, %15 : vector<32x128xf32>
    %cst_15 = arith.constant dense<0.000000e+00> : vector<128xf32>
    %21 = vector.multi_reduction <add>, %20, %cst_15 [0] : vector<32x128xf32> to vector<128xf32>
    %22 = vector.shape_cast %21 : vector<128xf32> to vector<1x128xf32>
    %cst_16 = arith.constant 3.200000e+01 : f32
    %23 = vector.broadcast %cst_16 : f32 to vector<1x128xf32>
    %24 = arith.divf %22, %23 : vector<1x128xf32>
    %25 = arith.mulf %19, %19 : vector<1x128xf32>
    %26 = arith.subf %24, %25 : vector<1x128xf32>
    %27 = vector.broadcast %19 : vector<1x128xf32> to vector<32x128xf32>
    %28 = arith.subf %15, %27 : vector<32x128xf32>
    %cst_17 = arith.constant 9.99999974E-6 : f32
    %29 = vector.broadcast %cst_17 : f32 to vector<1x128xf32>
    %30 = arith.addf %26, %29 : vector<1x128xf32>
    %31 = math.rsqrt %30 : vector<1x128xf32>
    %32 = vector.broadcast %31 : vector<1x128xf32> to vector<32x128xf32>
    %33 = arith.mulf %28, %32 : vector<32x128xf32>
    %c0_18 = arith.constant 0 : index
    %c0_19 = arith.constant 0 : index
    %c0_20 = arith.constant 0 : index
    %34 = vector.load %arg6[%c0_18, %c0_19, %c0_20] : memref<2x32x1xf32, #tpu.memory_space<vmem>>, vector<1x32x1xf32>
    %35 = vector.shape_cast %34 : vector<1x32x1xf32> to vector<32x1xf32>
    %36 = vector.broadcast %35 : vector<32x1xf32> to vector<32x128xf32>
    %37 = arith.mulf %33, %36 : vector<32x128xf32>
    %c0_21 = arith.constant 0 : index
    %c0_22 = arith.constant 0 : index
    %c0_23 = arith.constant 0 : index
    %38 = vector.load %arg7[%c0_21, %c0_22, %c0_23] : memref<2x32x1xf32, #tpu.memory_space<vmem>>, vector<1x32x1xf32>
    %39 = vector.shape_cast %38 : vector<1x32x1xf32> to vector<32x1xf32>
    %40 = vector.broadcast %39 : vector<32x1xf32> to vector<32x128xf32>
    %41 = arith.addf %37, %40 : vector<32x128xf32>
    %cst_24 = arith.constant 0.00999999977 : f32
    %42 = vector.broadcast %cst_24 : f32 to vector<32x128xf32>
    %43 = arith.mulf %42, %41 : vector<32x128xf32>
    %44 = arith.maximumf %41, %43 : vector<32x128xf32>
    %c1 = arith.constant 1 : index
    %c0_25 = arith.constant 0 : index
    %c0_26 = arith.constant 0 : index
    %45 = vector.load %arg4[%c1, %c0_25, %c0_26] : memref<2x32x32xf32, #tpu.memory_space<vmem>>, vector<1x32x32xf32>
    %46 = vector.shape_cast %45 : vector<1x32x32xf32> to vector<32x32xf32>
    %cst_27 = arith.constant dense<0.000000e+00> : vector<32x128xf32>
    %47 = tpu.matmul %46, %44, %cst_27 {dimension_numbers = #tpu.dot_dimension_numbers<[1], [0], [0], [1], [0, 0, 1, 1], [], []>} : vector<32x32xf32>, vector<32x128xf32>, vector<32x128xf32> -> vector<32x128xf32>
    %c1_28 = arith.constant 1 : index
    %c0_29 = arith.constant 0 : index
    %c0_30 = arith.constant 0 : index
    %48 = vector.load %arg5[%c1_28, %c0_29, %c0_30] : memref<2x32x1xf32, #tpu.memory_space<vmem>>, vector<1x32x1xf32>
    %49 = vector.shape_cast %48 : vector<1x32x1xf32> to vector<32x1xf32>
    %50 = vector.broadcast %49 : vector<32x1xf32> to vector<32x128xf32>
    %51 = arith.addf %47, %50 : vector<32x128xf32>
    %cst_31 = arith.constant dense<0.000000e+00> : vector<128xf32>
    %52 = vector.multi_reduction <add>, %51, %cst_31 [0] : vector<32x128xf32> to vector<128xf32>
    %53 = vector.shape_cast %52 : vector<128xf32> to vector<1x128xf32>
    %cst_32 = arith.constant 3.200000e+01 : f32
    %54 = vector.broadcast %cst_32 : f32 to vector<1x128xf32>
    %55 = arith.divf %53, %54 : vector<1x128xf32>
    %56 = arith.mulf %51, %51 : vector<32x128xf32>
    %cst_33 = arith.constant dense<0.000000e+00> : vector<128xf32>
    %57 = vector.multi_reduction <add>, %56, %cst_33 [0] : vector<32x128xf32> to vector<128xf32>
    %58 = vector.shape_cast %57 : vector<128xf32> to vector<1x128xf32>
    %cst_34 = arith.constant 3.200000e+01 : f32
    %59 = vector.broadcast %cst_34 : f32 to vector<1x128xf32>
    %60 = arith.divf %58, %59 : vector<1x128xf32>
    %61 = arith.mulf %55, %55 : vector<1x128xf32>
    %62 = arith.subf %60, %61 : vector<1x128xf32>
    %63 = vector.broadcast %55 : vector<1x128xf32> to vector<32x128xf32>
    %64 = arith.subf %51, %63 : vector<32x128xf32>
    %cst_35 = arith.constant 9.99999974E-6 : f32
    %65 = vector.broadcast %cst_35 : f32 to vector<1x128xf32>
    %66 = arith.addf %62, %65 : vector<1x128xf32>
    %67 = math.rsqrt %66 : vector<1x128xf32>
    %68 = vector.broadcast %67 : vector<1x128xf32> to vector<32x128xf32>
    %69 = arith.mulf %64, %68 : vector<32x128xf32>
    %c1_36 = arith.constant 1 : index
    %c0_37 = arith.constant 0 : index
    %c0_38 = arith.constant 0 : index
    %70 = vector.load %arg6[%c1_36, %c0_37, %c0_38] : memref<2x32x1xf32, #tpu.memory_space<vmem>>, vector<1x32x1xf32>
    %71 = vector.shape_cast %70 : vector<1x32x1xf32> to vector<32x1xf32>
    %72 = vector.broadcast %71 : vector<32x1xf32> to vector<32x128xf32>
    %73 = arith.mulf %69, %72 : vector<32x128xf32>
    %c1_39 = arith.constant 1 : index
    %c0_40 = arith.constant 0 : index
    %c0_41 = arith.constant 0 : index
    %74 = vector.load %arg7[%c1_39, %c0_40, %c0_41] : memref<2x32x1xf32, #tpu.memory_space<vmem>>, vector<1x32x1xf32>
    %75 = vector.shape_cast %74 : vector<1x32x1xf32> to vector<32x1xf32>
    %76 = vector.broadcast %75 : vector<32x1xf32> to vector<32x128xf32>
    %77 = arith.addf %73, %76 : vector<32x128xf32>
    %cst_42 = arith.constant 0.00999999977 : f32
    %78 = vector.broadcast %cst_42 : f32 to vector<32x128xf32>
    %79 = arith.mulf %78, %77 : vector<32x128xf32>
    %80 = arith.maximumf %77, %79 : vector<32x128xf32>
    %c0_43 = arith.constant 0 : index
    %c0_44 = arith.constant 0 : index
    %81 = vector.load %arg8[%c0_43, %c0_44] : memref<32x1xf32, #tpu.memory_space<vmem>>, vector<32x1xf32>
    %82 = vector.broadcast %81 : vector<32x1xf32> to vector<32x128xf32>
    %83 = arith.mulf %80, %82 : vector<32x128xf32>
    %cst_45 = arith.constant dense<0.000000e+00> : vector<128xf32>
    %84 = vector.multi_reduction <add>, %83, %cst_45 [0] : vector<32x128xf32> to vector<128xf32>
    %85 = vector.shape_cast %84 : vector<128xf32> to vector<1x128xf32>
    %c0_46 = arith.constant 0 : index
    %c0_47 = arith.constant 0 : index
    %86 = vector.load %arg9[%c0_46, %c0_47] : memref<1x1xf32, #tpu.memory_space<vmem>>, vector<1x1xf32>
    %87 = vector.broadcast %86 : vector<1x1xf32> to vector<1x128xf32>
    %88 = arith.addf %85, %87 : vector<1x128xf32>
    %89 = arith.negf %88 : vector<1x128xf32>
    %90 = math.exp %89 : vector<1x128xf32>
    %cst_48 = arith.constant 1.000000e+00 : f32
    %91 = vector.broadcast %cst_48 : f32 to vector<1x128xf32>
    %92 = arith.addf %91, %90 : vector<1x128xf32>
    %93 = arith.divf %91, %92 : vector<1x128xf32>
    %c0_49 = arith.constant 0 : index
    %c0_50 = arith.constant 0 : index
    %94 = vector.load %arg10[%c0_49, %c0_50] : memref<1x128xf32, #tpu.memory_space<vmem>>, vector<1x128xf32>
    tpu.vector_store %arg10[%c0_49, %c0_50], %93 {strides = array<i32>} : memref<1x128xf32, #tpu.memory_space<vmem>>, vector<1x128xf32>,
    return
  }
  func.func @transform_0(%arg0: i32) -> (i32, i32) {
    %c0_i32 = arith.constant 0 : i32
    %c0_i32_0 = arith.constant 0 : i32
    return %arg0, %c0_i32 : i32, i32
  }
  func.func @transform_1(%arg0: i32) -> (i32, i32) {
    %c0_i32 = arith.constant 0 : i32
    %c0_i32_0 = arith.constant 0 : i32
    %c0_i32_1 = arith.constant 0 : i32
    return %c0_i32, %c0_i32_0 : i32, i32
  }
  func.func @transform_2(%arg0: i32) -> (i32, i32) {
    %c0_i32 = arith.constant 0 : i32
    %c0_i32_0 = arith.constant 0 : i32
    %c0_i32_1 = arith.constant 0 : i32
    return %c0_i32, %c0_i32_0 : i32, i32
  }
  func.func @transform_3(%arg0: i32) -> (i32, i32, i32) {
    %c0_i32 = arith.constant 0 : i32
    %c0_i32_0 = arith.constant 0 : i32
    %c0_i32_1 = arith.constant 0 : i32
    %c0_i32_2 = arith.constant 0 : i32
    return %c0_i32, %c0_i32_0, %c0_i32_1 : i32, i32, i32
  }
  func.func @transform_4(%arg0: i32) -> (i32, i32, i32) {
    %c0_i32 = arith.constant 0 : i32
    %c0_i32_0 = arith.constant 0 : i32
    %c0_i32_1 = arith.constant 0 : i32
    %c0_i32_2 = arith.constant 0 : i32
    return %c0_i32, %c0_i32_0, %c0_i32_1 : i32, i32, i32
  }
  func.func @transform_5(%arg0: i32) -> (i32, i32, i32) {
    %c0_i32 = arith.constant 0 : i32
    %c0_i32_0 = arith.constant 0 : i32
    %c0_i32_1 = arith.constant 0 : i32
    %c0_i32_2 = arith.constant 0 : i32
    return %c0_i32, %c0_i32_0, %c0_i32_1 : i32, i32, i32
  }
  func.func @transform_6(%arg0: i32) -> (i32, i32, i32) {
    %c0_i32 = arith.constant 0 : i32
    %c0_i32_0 = arith.constant 0 : i32
    %c0_i32_1 = arith.constant 0 : i32
    %c0_i32_2 = arith.constant 0 : i32
    return %c0_i32, %c0_i32_0, %c0_i32_1 : i32, i32, i32
  }
  func.func @transform_7(%arg0: i32) -> (i32, i32) {
    %c0_i32 = arith.constant 0 : i32
    %c0_i32_0 = arith.constant 0 : i32
    %c0_i32_1 = arith.constant 0 : i32
    return %c0_i32, %c0_i32_0 : i32, i32
  }
  func.func @transform_8(%arg0: i32) -> (i32, i32) {
    %c0_i32 = arith.constant 0 : i32
    %c0_i32_0 = arith.constant 0 : i32
    %c0_i32_1 = arith.constant 0 : i32
    return %c0_i32, %c0_i32_0 : i32, i32
  }
  func.func @transform_9(%arg0: i32) -> (i32, i32) {
    %c0_i32 = arith.constant 0 : i32
    %c0_i32_0 = arith.constant 0 : i32
    return %c0_i32, %arg0 : i32, i32
  }
}

</mosaic_0001>

<llo_original>
// kernel: tpu_custom_call.1
$region0: #{tpu_custom_call.1}
  #allocation0 [shape = 'u32[]', space=smem, size = 0x4, offset = 0x4, fixed_abs, tag = 'smem constant byte address 0x4 - core index']
  #allocation1 [shape = 'u32[144,128]{1,0:T(1,128)}', space=vmem, size = 0x12000, scoped, tag = 'internal scratch']
  #allocation2 [shape = 'f32[1,1]{1,0:T(1,128)S(1)}', space=vmem, size = 0x200, scoped, tag = 'scoped memory for tpu_custom_call.1']
  %s0 = inlined_call_operand.vmem [shape: f32[16,16], index: 0, kind: input, shape index: {}]
  %s1 = inlined_call_operand.vmem [shape: f32[32,16], index: 1, kind: input, shape index: {}]
  %s2 = inlined_call_operand.vmem [shape: f32[32,1], index: 2, kind: input, shape index: {}]
  %s3 = inlined_call_operand.vmem [shape: f32[2,32,32], index: 3, kind: input, shape index: {}]
  %s4 = inlined_call_operand.vmem [shape: f32[2,32,1], index: 4, kind: input, shape index: {}]
  %s5 = inlined_call_operand.vmem [shape: f32[2,32,1], index: 5, kind: input, shape index: {}]
  %s6 = inlined_call_operand.vmem [shape: f32[2,32,1], index: 6, kind: input, shape index: {}]
  %s7 = inlined_call_operand.vmem [shape: f32[32,1], index: 7, kind: input, shape index: {}]
  %s8 = inlined_call_operand.<no memory space> [shape: f32[1,1], index: 8, kind: input, shape index: {}]
  %s9 = inlined_call_operand.hbm [shape: f32[1,16], index: 9, kind: output, shape index: {}]
  %s10 = sld [smem:[#allocation0]]
  $region46: #{tpu_custom_call.1} parent=0
    _
  %s12 = ssub.s32 1, %s10
  %s13 = scalar_select 0, %s12, %s10
  %v14 = vstv %s8
  %15 = vst [vmem:[#allocation2] sm:$0x1] %v14
  $region1: #{tpu_custom_call.1} parent=0
    #allocation3 [shape = 'u8[512]{0}', space=vmem, size = 0x400, scoped, tag = 'output window, operand 0, single buffered']
    #allocation4 [shape = 's32[1]{0}', space=sflag, size = 0x4, scoped, tag = 'scoped memory for tpu_custom_call.1']
    %16 = vsyncpa [#allocation4], 0
    // Predicated region
    $region2: #{tpu_custom_call.1} parent=1 // pred_check
      _
    $region3: #{tpu_custom_call.1} parent=1 // pred_check_branch
      %18 = sbr.rel (0) target = $region5
    $region4: #{tpu_custom_call.1} parent=1 // pred_region
      _
    $region5: #{tpu_custom_call.1} parent=1 // pred_fallthru
      _
    // Predicated region
    $region6: #{tpu_custom_call.1} parent=1 // pred_check
      _
    $region7: #{tpu_custom_call.1} parent=1 // pred_check_branch
      %20 = sbr.rel (0) target = $region9
    $region8: #{tpu_custom_call.1} parent=1 // pred_region
      _
    $region9: #{tpu_custom_call.1} parent=1 // pred_fallthru
      _
    // Predicated region
    $region10: #{tpu_custom_call.1} parent=1 // pred_check
      _
    $region11: #{tpu_custom_call.1} parent=1 // pred_check_branch
      %22 = sbr.rel (0) target = $region13
    $region12: #{tpu_custom_call.1} parent=1 // pred_region
      _
    $region13: #{tpu_custom_call.1} parent=1 // pred_fallthru
      _
    // Predicated region
    $region14: #{tpu_custom_call.1} parent=1 // pred_check
      _
    $region15: #{tpu_custom_call.1} parent=1 // pred_check_branch
      %24 = sbr.rel (0) target = $region17
    $region16: #{tpu_custom_call.1} parent=1 // pred_region
      _
    $region17: #{tpu_custom_call.1} parent=1 // pred_fallthru
      _
    // Predicated region
    $region18: #{tpu_custom_call.1} parent=1 // pred_check
      _
    $region19: #{tpu_custom_call.1} parent=1 // pred_check_branch
      %26 = sbr.rel (0) target = $region21
    $region20: #{tpu_custom_call.1} parent=1 // pred_region
      _
    $region21: #{tpu_custom_call.1} parent=1 // pred_fallthru
      _
    // Predicated region
    $region22: #{tpu_custom_call.1} parent=1 // pred_check
      _
    $region23: #{tpu_custom_call.1} parent=1 // pred_check_branch
      %28 = sbr.rel (0) target = $region25
    $region24: #{tpu_custom_call.1} parent=1 // pred_region
      _
    $region25: #{tpu_custom_call.1} parent=1 // pred_fallthru
      _
    // Predicated region
    $region26: #{tpu_custom_call.1} parent=1 // pred_check
      _
    $region27: #{tpu_custom_call.1} parent=1 // pred_check_branch
      %30 = sbr.rel (0) target = $region29
    $region28: #{tpu_custom_call.1} parent=1 // pred_region
      _
    $region29: #{tpu_custom_call.1} parent=1 // pred_fallthru
      _
    // Predicated region
    $region30: #{tpu_custom_call.1} parent=1 // pred_check
      _
    $region31: #{tpu_custom_call.1} parent=1 // pred_check_branch
      %32 = sbr.rel (0) target = $region33
    $region32: #{tpu_custom_call.1} parent=1 // pred_region
      _
    $region33: #{tpu_custom_call.1} parent=1 // pred_fallthru
      _
    // Predicated region
    $region34: #{tpu_custom_call.1} parent=1 // pred_check
      _
    $region35: #{tpu_custom_call.1} parent=1 // pred_check_branch
      %34 = sbr.rel (0) target = $region37
    $region36: #{tpu_custom_call.1} parent=1 // pred_region
      _
    $region37: #{tpu_custom_call.1} parent=1 // pred_fallthru
      _
    %v35 = vld [vmem:[%s1] sm:$0xff]
    %v36 = vld [vmem:[%s1 + $0x8] sm:$0xff]
    %v37 = vld [vmem:[%s1 + $0x10] sm:$0xff]
    %v38 = vld [vmem:[%s1 + $0x18] sm:$0xff]
    %v39 = vld [vmem:[%s0] sm:$0xff]
    %v40 = vld [vmem:[%s0 + $0x8] sm:$0xff]
    %v41 = vld [vmem:[%s0 + $0x10] sm:$0xff]
    %v42 = vld [vmem:[%s0 + $0x18] sm:$0xff]
    %v43 = vld [vmem:[%s0 + $0x20] sm:$0xff]
    %v44 = vld [vmem:[%s0 + $0x28] sm:$0xff]
    %v45 = vld [vmem:[%s0 + $0x30] sm:$0xff]
    %v46 = vld [vmem:[%s0 + $0x38] sm:$0xff]
    %v47 = vld [vmem:[%s0 + $0x40] sm:$0xff]
    %v48 = vld [vmem:[%s0 + $0x48] sm:$0xff]
    %v49 = vld [vmem:[%s0 + $0x50] sm:$0xff]
    %v50 = vld [vmem:[%s0 + $0x58] sm:$0xff]
    %v51 = vld [vmem:[%s0 + $0x60] sm:$0xff]
    %v52 = vld [vmem:[%s0 + $0x68] sm:$0xff]
    %v53 = vld [vmem:[%s0 + $0x70] sm:$0xff]
    %v54 = vld [vmem:[%s0 + $0x78] sm:$0xff]
    %v55 = vld [vmem:[%s2] sm:$0xff]
    %v56 = vld [vmem:[%s2 + $0x8] sm:$0xff]
    %v57 = vld [vmem:[%s2 + $0x10] sm:$0xff]
    %v58 = vld [vmem:[%s2 + $0x18] sm:$0xff]
    %60 = vset.pattern.permute.xlu0 0
    %61 = vperm.xlu0 %60, %v55
    %v62 = vpop.permute.xlu0 %61
    %65 = vset.pattern.permute.xlu0 0
    %66 = vperm.xlu0 %65, %v56
    %v67 = vpop.permute.xlu0 %66
    %70 = vset.pattern.permute.xlu0 0
    %71 = vperm.xlu0 %70, %v57
    %v72 = vpop.permute.xlu0 %71
    %75 = vset.pattern.permute.xlu0 0
    %76 = vperm.xlu0 %75, %v58
    %v77 = vpop.permute.xlu0 %76
    %vm79 = vcmask 130048
    %v81 = vsel %vm79, %v35, 0
    %v84 = vsel %vm79, %v36, 0
    %v87 = vsel %vm79, %v37, 0
    %v90 = vsel %vm79, %v38, 0
    %v93 = vsel %vm79, %v39, 0
    %v96 = vsel %vm79, %v40, 0
    %v99 = vsel %vm79, %v41, 0
    %v102 = vsel %vm79, %v42, 0
    %v105 = vsel %vm79, %v43, 0
    %v108 = vsel %vm79, %v44, 0
    %v111 = vsel %vm79, %v45, 0
    %v114 = vsel %vm79, %v46, 0
    %v117 = vsel %vm79, %v47, 0
    %v120 = vsel %vm79, %v48, 0
    %v123 = vsel %vm79, %v49, 0
    %v126 = vsel %vm79, %v50, 0
    %v129 = vsel %vm79, %v51, 0
    %v132 = vsel %vm79, %v52, 0
    %v135 = vsel %vm79, %v53, 0
    %v138 = vsel %vm79, %v54, 0
    %140 = vmatprep.subr.mxu0 0.0
    %141 = vmatpush1.xpose.msra.mxu0 %v93
    %142 = vmatprep.subr.mxu0 0.0
    %143 = vmatpush1.xpose.msra.mxu0 %v96
    %144 = vmatprep.subr.mxu0 0.0
    %145 = vmatpush1.xpose.msra.mxu0 %v99
    %146 = vmatprep.subr.mxu0 0.0
    %147 = vmatpush1.xpose.msra.mxu0 %v102
    %148 = vmatprep.subr.mxu0 0.0
    %149 = vmatpush1.xpose.msra.mxu0 %v105
    %150 = vmatprep.subr.mxu0 0.0
    %151 = vmatpush1.xpose.msra.mxu0 %v108
    %152 = vmatprep.subr.mxu0 0.0
    %153 = vmatpush1.xpose.msra.mxu0 %v111
    %154 = vmatprep.subr.mxu0 0.0
    %155 = vmatpush1.xpose.msra.mxu0 %v114
    %156 = vmatprep.subr.mxu0 0.0
    %157 = vmatpush1.xpose.msra.mxu0 %v117
    %158 = vmatprep.subr.mxu0 0.0
    %159 = vmatpush1.xpose.msra.mxu0 %v120
    %160 = vmatprep.subr.mxu0 0.0
    %161 = vmatpush1.xpose.msra.mxu0 %v123
    %162 = vmatprep.subr.mxu0 0.0
    %163 = vmatpush1.xpose.msra.mxu0 %v126
    %164 = vmatprep.subr.mxu0 0.0
    %165 = vmatpush1.xpose.msra.mxu0 %v129
    %166 = vmatprep.subr.mxu0 0.0
    %167 = vmatpush1.xpose.msra.mxu0 %v132
    %168 = vmatprep.subr.mxu0 0.0
    %169 = vmatpush1.xpose.msra.mxu0 %v135
    %170 = vmatprep.subr.mxu0 0.0
    %171 = vmatpush1.xpose.msra.mxu0 %v138
    %172 = vmatprep.subr.mxu0 0.0
    %173 = vmatpush1.xpose.msra.mxu0 0.0
    %174 = vmatprep.subr.mxu0 0.0
    %175 = vmatpush1.xpose.msra.mxu0 0.0
    %176 = vmatprep.subr.mxu0 0.0
    %177 = vmatpush1.xpose.msra.mxu0 0.0
    %178 = vmatprep.subr.mxu0 0.0
    %179 = vmatpush1.xpose.msra.mxu0 0.0
    %180 = vmatprep.subr.mxu0 0.0
    %181 = vmatpush1.xpose.msra.mxu0 0.0
    %182 = vmatprep.subr.mxu0 0.0
    %183 = vmatpush1.xpose.msra.mxu0 0.0
    %184 = vmatprep.subr.mxu0 0.0
    %185 = vmatpush1.xpose.msra.mxu0 0.0
    %186 = vmatprep.subr.mxu0 0.0
    %187 = vmatpush1.xpose.msra.mxu0 0.0
    %188 = vmatprep.subr.mxu0 0.0
    %189 = vmatpush1.xpose.msra.mxu0 0.0
    %190 = vmatprep.subr.mxu0 0.0
    %191 = vmatpush1.xpose.msra.mxu0 0.0
    %192 = vmatprep.subr.mxu0 0.0
    %193 = vmatpush1.xpose.msra.mxu0 0.0
    %194 = vmatprep.subr.mxu0 0.0
    %195 = vmatpush1.xpose.msra.mxu0 0.0
    %196 = vmatprep.subr.mxu0 0.0
    %197 = vmatpush1.xpose.msra.mxu0 0.0
    %198 = vmatprep.subr.mxu0 0.0
    %199 = vmatpush1.xpose.msra.mxu0 0.0
    %200 = vmatprep.subr.mxu0 0.0
    %201 = vmatpush1.xpose.msra.mxu0 0.0
    %202 = vmatprep.subr.mxu0 0.0
    %203 = vmatpush1.xpose.msra.mxu0 0.0
    %204 = vmatprep.mubr.f32.mxu0 0.0
    %205 = vmatmul.mubr.f32.gmra.mrb[0].mxu0 %v81
    %v206 = vpop.f32.mrb[0].mxu0
    %v207 = vadd.f32 %v62, %v206
    %v208 = vpop.f32.mrb[0].mxu0
    %209 = vmatprep.mubr.f32.mxu0 0.0
    %210 = vmatmul.mubr.f32.gmra.mrb[0].mxu0 %v84
    %v211 = vpop.f32.mrb[0].mxu0
    %v212 = vadd.f32 %v67, %v211
    %v213 = vpop.f32.mrb[0].mxu0
    %214 = vmatprep.mubr.f32.mxu0 0.0
    %215 = vmatmul.mubr.f32.gmra.mrb[0].mxu0 %v87
    %v216 = vpop.f32.mrb[0].mxu0
    %v217 = vadd.f32 %v72, %v216
    %v218 = vpop.f32.mrb[0].mxu0
    %219 = vmatprep.mubr.f32.mxu0 0.0
    %220 = vmatmul.mubr.f32.gmra.mrb[0].mxu0 %v90
    %v221 = vpop.f32.mrb[0].mxu0
    %v222 = vadd.f32 %v77, %v221
    %v223 = vpop.f32.mrb[0].mxu0
    %224 = vdwg.mxu0
    %v225 = vmul.f32 %v207, 0.01
    %v226 = vmul.f32 %v212, 0.01
    %v227 = vmul.f32 %v217, 0.01
    %v228 = vmul.f32 %v222, 0.01
    %v229 = vmax.f32 %v207, %v225
    %v230 = vmax.f32 %v212, %v226
    %v231 = vmax.f32 %v217, %v227
    %v232 = vmax.f32 %v222, %v228
    %v233 = vld [vmem:[%s3] sm:$0xff]
    %v234 = vld [vmem:[%s3 + $0x8] sm:$0xff]
    %v235 = vld [vmem:[%s3 + $0x10] sm:$0xff]
    %v236 = vld [vmem:[%s3 + $0x18] sm:$0xff]
    %v237 = vld [vmem:[%s4] sm:$0xff]
    %v238 = vld [vmem:[%s4 + $0x8] sm:$0xff]
    %v239 = vld [vmem:[%s4 + $0x10] sm:$0xff]
    %v240 = vld [vmem:[%s4 + $0x18] sm:$0xff]
    %242 = vset.pattern.permute.xlu0 0
    %243 = vperm.xlu0 %242, %v237
    %v244 = vpop.permute.xlu0 %243
    %247 = vset.pattern.permute.xlu0 0
    %248 = vperm.xlu0 %247, %v238
    %v249 = vpop.permute.xlu0 %248
    %252 = vset.pattern.permute.xlu0 0
    %253 = vperm.xlu0 %252, %v239
    %v254 = vpop.permute.xlu0 %253
    %257 = vset.pattern.permute.xlu0 0
    %258 = vperm.xlu0 %257, %v240
    %v259 = vpop.permute.xlu0 %258
    %vm261 = vcmask 261120
    %v263 = vsel %vm261, %v233, 0
    %v266 = vsel %vm261, %v234, 0
    %v269 = vsel %vm261, %v235, 0
    %v272 = vsel %vm261, %v236, 0
    %274 = vmatprep.subr.mxu0 0.0
    %275 = vmatpush1.msra.mxu0 %v229
    %276 = vmatprep.subr.mxu0 0.0
    %277 = vmatpush1.msra.mxu0 %v230
    %278 = vmatprep.subr.mxu0 0.0
    %279 = vmatpush1.msra.mxu0 %v231
    %280 = vmatprep.subr.mxu0 0.0
    %281 = vmatpush1.msra.mxu0 %v232
    %282 = vmatprep.subr.mxu0 0.0
    %283 = vmatpush1.msra.mxu0 0.0
    %284 = vmatprep.subr.mxu0 0.0
    %285 = vmatpush1.msra.mxu0 0.0
    %286 = vmatprep.subr.mxu0 0.0
    %287 = vmatpush1.msra.mxu0 0.0
    %288 = vmatprep.subr.mxu0 0.0
    %289 = vmatpush1.msra.mxu0 0.0
    %290 = vmatprep.subr.mxu0 0.0
    %291 = vmatpush1.msra.mxu0 0.0
    %292 = vmatprep.subr.mxu0 0.0
    %293 = vmatpush1.msra.mxu0 0.0
    %294 = vmatprep.subr.mxu0 0.0
    %295 = vmatpush1.msra.mxu0 0.0
    %296 = vmatprep.subr.mxu0 0.0
    %297 = vmatpush1.msra.mxu0 0.0
    %298 = vmatprep.subr.mxu0 0.0
    %299 = vmatpush1.msra.mxu0 0.0
    %300 = vmatprep.subr.mxu0 0.0
    %301 = vmatpush1.msra.mxu0 0.0
    %302 = vmatprep.subr.mxu0 0.0
    %303 = vmatpush1.msra.mxu0 0.0
    %304 = vmatprep.subr.mxu0 0.0
    %305 = vmatpush1.msra.mxu0 0.0
    %306 = vmatprep.subr.mxu0 0.0
    %307 = vmatpush1.msra.mxu0 0.0
    %308 = vmatprep.subr.mxu0 0.0
    %309 = vmatpush1.msra.mxu0 0.0
    %310 = vmatprep.subr.mxu0 0.0
    %311 = vmatpush1.msra.mxu0 0.0
    %312 = vmatprep.subr.mxu0 0.0
    %313 = vmatpush1.msra.mxu0 0.0
    %314 = vmatprep.subr.mxu0 0.0
    %315 = vmatpush1.msra.mxu0 0.0
    %316 = vmatprep.subr.mxu0 0.0
    %317 = vmatpush1.msra.mxu0 0.0
    %318 = vmatprep.subr.mxu0 0.0
    %319 = vmatpush1.msra.mxu0 0.0
    %320 = vmatprep.subr.mxu0 0.0
    %321 = vmatpush1.msra.mxu0 0.0
    %322 = vmatprep.subr.mxu0 0.0
    %323 = vmatpush1.msra.mxu0 0.0
    %324 = vmatprep.subr.mxu0 0.0
    %325 = vmatpush1.msra.mxu0 0.0
    %326 = vmatprep.subr.mxu0 0.0
    %327 = vmatpush1.msra.mxu0 0.0
    %328 = vmatprep.subr.mxu0 0.0
    %329 = vmatpush1.msra.mxu0 0.0
    %330 = vmatprep.subr.mxu0 0.0
    %331 = vmatpush1.msra.mxu0 0.0
    %332 = vmatprep.subr.mxu0 0.0
    %333 = vmatpush1.msra.mxu0 0.0
    %334 = vmatprep.subr.mxu0 0.0
    %335 = vmatpush1.msra.mxu0 0.0
    %336 = vmatprep.subr.mxu0 0.0
    %337 = vmatpush1.msra.mxu0 0.0
    %338 = vmatprep.mubr.f32.mxu0 0.0
    %339 = vmatmul.mubr.f32.gmra.mrb[0].mxu0 %v263
    %v340 = vpop.f32.mrb[0].mxu0
    %v341 = vadd.f32 %v244, %v340
    %v342 = vpop.f32.mrb[0].mxu0
    %343 = vmatprep.mubr.f32.mxu0 0.0
    %344 = vmatmul.mubr.f32.gmra.mrb[0].mxu0 %v266
    %v345 = vpop.f32.mrb[0].mxu0
    %v346 = vadd.f32 %v249, %v345
    %v347 = vpop.f32.mrb[0].mxu0
    %348 = vmatprep.mubr.f32.mxu0 0.0
    %349 = vmatmul.mubr.f32.gmra.mrb[0].mxu0 %v269
    %v350 = vpop.f32.mrb[0].mxu0
    %v351 = vadd.f32 %v254, %v350
    %v352 = vpop.f32.mrb[0].mxu0
    %353 = vmatprep.mubr.f32.mxu0 0.0
    %354 = vmatmul.mubr.f32.gmra.mrb[0].mxu0 %v272
    %v355 = vpop.f32.mrb[0].mxu0
    %v356 = vadd.f32 %v259, %v355
    %v357 = vpop.f32.mrb[0].mxu0
    %358 = vdwg.mxu0
    %v359 = vadd.f32 %v341, %v346
    %v360 = vadd.f32 %v359, %v351
    %v361 = vadd.f32 %v360, %v356
    %v362 = vrot.slane %v361, 4
    %v363 = vadd.f32 %v361, %v362
    %v364 = vrot.slane %v363, 2
    %v365 = vadd.f32 %v363, %v364
    %v366 = vrot.slane %v365, 1
    %v367 = vadd.f32 %v365, %v366
    %v368 = vrcp.pop 32.0
    %v369 = vmul.f32 %v367, %v368
    %v370 = vmul.f32 %v341, %v341
    %v371 = vmul.f32 %v346, %v346
    %v372 = vmul.f32 %v351, %v351
    %v373 = vmul.f32 %v356, %v356
    %v374 = vadd.f32 %v370, %v371
    %v375 = vadd.f32 %v374, %v372
    %v376 = vadd.f32 %v375, %v373
    %v377 = vrot.slane %v376, 4
    %v378 = vadd.f32 %v376, %v377
    %v379 = vrot.slane %v378, 2
    %v380 = vadd.f32 %v378, %v379
    %v381 = vrot.slane %v380, 1
    %v382 = vadd.f32 %v380, %v381
    %v383 = vmul.f32 %v382, %v368
    %v384 = vmul.f32 %v369, %v369
    %v385 = vsub.f32 %v383, %v384
    %v386 = vsub.f32 %v341, %v369
    %v387 = vsub.f32 %v346, %v369
    %v388 = vsub.f32 %v351, %v369
    %v389 = vsub.f32 %v356, %v369
    %v390 = vadd.f32 %v385, 1e-05
    %v391 = vrsqrt.pop %v390
    %v392 = vmul.f32 %v386, %v391
    %v393 = vmul.f32 %v387, %v391
    %v394 = vmul.f32 %v388, %v391
    %v395 = vmul.f32 %v389, %v391
    %v396 = vld [vmem:[%s5] sm:$0xff]
    %v397 = vld [vmem:[%s5 + $0x8] sm:$0xff]
    %v398 = vld [vmem:[%s5 + $0x10] sm:$0xff]
    %v399 = vld [vmem:[%s5 + $0x18] sm:$0xff]
    %401 = vset.pattern.permute.xlu0 0
    %402 = vperm.xlu0 %401, %v396
    %v403 = vpop.permute.xlu0 %402
    %406 = vset.pattern.permute.xlu0 0
    %407 = vperm.xlu0 %406, %v397
    %v408 = vpop.permute.xlu0 %407
    %411 = vset.pattern.permute.xlu0 0
    %412 = vperm.xlu0 %411, %v398
    %v413 = vpop.permute.xlu0 %412
    %416 = vset.pattern.permute.xlu0 0
    %417 = vperm.xlu0 %416, %v399
    %v418 = vpop.permute.xlu0 %417
    %v420 = vmul.f32 %v392, %v403
    %v421 = vmul.f32 %v393, %v408
    %v422 = vmul.f32 %v394, %v413
    %v423 = vmul.f32 %v395, %v418
    %v424 = vld [vmem:[%s6] sm:$0xff]
    %v425 = vld [vmem:[%s6 + $0x8] sm:$0xff]
    %v426 = vld [vmem:[%s6 + $0x10] sm:$0xff]
    %v427 = vld [vmem:[%s6 + $0x18] sm:$0xff]
    %429 = vset.pattern.permute.xlu0 0
    %430 = vperm.xlu0 %429, %v424
    %v431 = vpop.permute.xlu0 %430
    %434 = vset.pattern.permute.xlu0 0
    %435 = vperm.xlu0 %434, %v425
    %v436 = vpop.permute.xlu0 %435
    %439 = vset.pattern.permute.xlu0 0
    %440 = vperm.xlu0 %439, %v426
    %v441 = vpop.permute.xlu0 %440
    %444 = vset.pattern.permute.xlu0 0
    %445 = vperm.xlu0 %444, %v427
    %v446 = vpop.permute.xlu0 %445
    %v448 = vadd.f32 %v420, %v431
    %v449 = vadd.f32 %v421, %v436
    %v450 = vadd.f32 %v422, %v441
    %v451 = vadd.f32 %v423, %v446
    %v452 = vmul.f32 %v448, 0.01
    %v453 = vmul.f32 %v449, 0.01
    %v454 = vmul.f32 %v450, 0.01
    %v455 = vmul.f32 %v451, 0.01
    %v456 = vmax.f32 %v448, %v452
    %v457 = vmax.f32 %v449, %v453
    %v458 = vmax.f32 %v450, %v454
    %v459 = vmax.f32 %v451, %v455
    %s460 = scalar_lea.vmem %s3, 32
    %v461 = vld [vmem:[%s460] sm:$0xff]
    %v462 = vld [vmem:[%s460 + $0x8] sm:$0xff]
    %v463 = vld [vmem:[%s460 + $0x10] sm:$0xff]
    %v464 = vld [vmem:[%s460 + $0x18] sm:$0xff]
    %s465 = scalar_lea.vmem %s4, 32
    %v466 = vld [vmem:[%s465] sm:$0xff]
    %v467 = vld [vmem:[%s465 + $0x8] sm:$0xff]
    %v468 = vld [vmem:[%s465 + $0x10] sm:$0xff]
    %v469 = vld [vmem:[%s465 + $0x18] sm:$0xff]
    %471 = vset.pattern.permute.xlu0 0
    %472 = vperm.xlu0 %471, %v466
    %v473 = vpop.permute.xlu0 %472
    %476 = vset.pattern.permute.xlu0 0
    %477 = vperm.xlu0 %476, %v467
    %v478 = vpop.permute.xlu0 %477
    %481 = vset.pattern.permute.xlu0 0
    %482 = vperm.xlu0 %481, %v468
    %v483 = vpop.permute.xlu0 %482
    %486 = vset.pattern.permute.xlu0 0
    %487 = vperm.xlu0 %486, %v469
    %v488 = vpop.permute.xlu0 %487
    %v491 = vsel %vm261, %v461, 0
    %v494 = vsel %vm261, %v462, 0
    %v497 = vsel %vm261, %v463, 0
    %v500 = vsel %vm261, %v464, 0
    %502 = vmatprep.subr.mxu0 0.0
    %503 = vmatpush1.msra.mxu0 %v456
    %504 = vmatprep.subr.mxu0 0.0
    %505 = vmatpush1.msra.mxu0 %v457
    %506 = vmatprep.subr.mxu0 0.0
    %507 = vmatpush1.msra.mxu0 %v458
    %508 = vmatprep.subr.mxu0 0.0
    %509 = vmatpush1.msra.mxu0 %v459
    %510 = vmatprep.subr.mxu0 0.0
    %511 = vmatpush1.msra.mxu0 0.0
    %512 = vmatprep.subr.mxu0 0.0
    %513 = vmatpush1.msra.mxu0 0.0
    %514 = vmatprep.subr.mxu0 0.0
    %515 = vmatpush1.msra.mxu0 0.0
    %516 = vmatprep.subr.mxu0 0.0
    %517 = vmatpush1.msra.mxu0 0.0
    %518 = vmatprep.subr.mxu0 0.0
    %519 = vmatpush1.msra.mxu0 0.0
    %520 = vmatprep.subr.mxu0 0.0
    %521 = vmatpush1.msra.mxu0 0.0
    %522 = vmatprep.subr.mxu0 0.0
    %523 = vmatpush1.msra.mxu0 0.0
    %524 = vmatprep.subr.mxu0 0.0
    %525 = vmatpush1.msra.mxu0 0.0
    %526 = vmatprep.subr.mxu0 0.0
    %527 = vmatpush1.msra.mxu0 0.0
    %528 = vmatprep.subr.mxu0 0.0
    %529 = vmatpush1.msra.mxu0 0.0
    %530 = vmatprep.subr.mxu0 0.0
    %531 = vmatpush1.msra.mxu0 0.0
    %532 = vmatprep.subr.mxu0 0.0
    %533 = vmatpush1.msra.mxu0 0.0
    %534 = vmatprep.subr.mxu0 0.0
    %535 = vmatpush1.msra.mxu0 0.0
    %536 = vmatprep.subr.mxu0 0.0
    %537 = vmatpush1.msra.mxu0 0.0
    %538 = vmatprep.subr.mxu0 0.0
    %539 = vmatpush1.msra.mxu0 0.0
    %540 = vmatprep.subr.mxu0 0.0
    %541 = vmatpush1.msra.mxu0 0.0
    %542 = vmatprep.subr.mxu0 0.0
    %543 = vmatpush1.msra.mxu0 0.0
    %544 = vmatprep.subr.mxu0 0.0
    %545 = vmatpush1.msra.mxu0 0.0
    %546 = vmatprep.subr.mxu0 0.0
    %547 = vmatpush1.msra.mxu0 0.0
    %548 = vmatprep.subr.mxu0 0.0
    %549 = vmatpush1.msra.mxu0 0.0
    %550 = vmatprep.subr.mxu0 0.0
    %551 = vmatpush1.msra.mxu0 0.0
    %552 = vmatprep.subr.mxu0 0.0
    %553 = vmatpush1.msra.mxu0 0.0
    %554 = vmatprep.subr.mxu0 0.0
    %555 = vmatpush1.msra.mxu0 0.0
    %556 = vmatprep.subr.mxu0 0.0
    %557 = vmatpush1.msra.mxu0 0.0
    %558 = vmatprep.subr.mxu0 0.0
    %559 = vmatpush1.msra.mxu0 0.0
    %560 = vmatprep.subr.mxu0 0.0
    %561 = vmatpush1.msra.mxu0 0.0
    %562 = vmatprep.subr.mxu0 0.0
    %563 = vmatpush1.msra.mxu0 0.0
    %564 = vmatprep.subr.mxu0 0.0
    %565 = vmatpush1.msra.mxu0 0.0
    %566 = vmatprep.mubr.f32.mxu0 0.0
    %567 = vmatmul.mubr.f32.gmra.mrb[0].mxu0 %v491
    %v568 = vpop.f32.mrb[0].mxu0
    %v569 = vadd.f32 %v473, %v568
    %v570 = vpop.f32.mrb[0].mxu0
    %571 = vmatprep.mubr.f32.mxu0 0.0
    %572 = vmatmul.mubr.f32.gmra.mrb[0].mxu0 %v494
    %v573 = vpop.f32.mrb[0].mxu0
    %v574 = vadd.f32 %v478, %v573
    %v575 = vpop.f32.mrb[0].mxu0
    %576 = vmatprep.mubr.f32.mxu0 0.0
    %577 = vmatmul.mubr.f32.gmra.mrb[0].mxu0 %v497
    %v578 = vpop.f32.mrb[0].mxu0
    %v579 = vadd.f32 %v483, %v578
    %v580 = vpop.f32.mrb[0].mxu0
    %581 = vmatprep.mubr.f32.mxu0 0.0
    %582 = vmatmul.mubr.f32.gmra.mrb[0].mxu0 %v500
    %v583 = vpop.f32.mrb[0].mxu0
    %v584 = vadd.f32 %v488, %v583
    %v585 = vpop.f32.mrb[0].mxu0
    %586 = vdwg.mxu0
    %v587 = vadd.f32 %v569, %v574
    %v588 = vadd.f32 %v587, %v579
    %v589 = vadd.f32 %v588, %v584
    %v590 = vrot.slane %v589, 4
    %v591 = vadd.f32 %v589, %v590
    %v592 = vrot.slane %v591, 2
    %v593 = vadd.f32 %v591, %v592
    %v594 = vrot.slane %v593, 1
    %v595 = vadd.f32 %v593, %v594
    %v596 = vmul.f32 %v595, %v368
    %v597 = vmul.f32 %v569, %v569
    %v598 = vmul.f32 %v574, %v574
    %v599 = vmul.f32 %v579, %v579
    %v600 = vmul.f32 %v584, %v584
    %v601 = vadd.f32 %v597, %v598
    %v602 = vadd.f32 %v601, %v599
    %v603 = vadd.f32 %v602, %v600
    %v604 = vrot.slane %v603, 4
    %v605 = vadd.f32 %v603, %v604
    %v606 = vrot.slane %v605, 2
    %v607 = vadd.f32 %v605, %v606
    %v608 = vrot.slane %v607, 1
    %v609 = vadd.f32 %v607, %v608
    %v610 = vmul.f32 %v609, %v368
    %v611 = vmul.f32 %v596, %v596
    %v612 = vsub.f32 %v610, %v611
    %v613 = vsub.f32 %v569, %v596
    %v614 = vsub.f32 %v574, %v596
    %v615 = vsub.f32 %v579, %v596
    %v616 = vsub.f32 %v584, %v596
    %v617 = vadd.f32 %v612, 1e-05
    %v618 = vrsqrt.pop %v617
    %v619 = vmul.f32 %v613, %v618
    %v620 = vmul.f32 %v614, %v618
    %v621 = vmul.f32 %v615, %v618
    %v622 = vmul.f32 %v616, %v618
    %s623 = scalar_lea.vmem %s5, 32
    %v624 = vld [vmem:[%s623] sm:$0xff]
    %v625 = vld [vmem:[%s623 + $0x8] sm:$0xff]
    %v626 = vld [vmem:[%s623 + $0x10] sm:$0xff]
    %v627 = vld [vmem:[%s623 + $0x18] sm:$0xff]
    %629 = vset.pattern.permute.xlu0 0
    %630 = vperm.xlu0 %629, %v624
    %v631 = vpop.permute.xlu0 %630
    %634 = vset.pattern.permute.xlu0 0
    %635 = vperm.xlu0 %634, %v625
    %v636 = vpop.permute.xlu0 %635
    %639 = vset.pattern.permute.xlu0 0
    %640 = vperm.xlu0 %639, %v626
    %v641 = vpop.permute.xlu0 %640
    %644 = vset.pattern.permute.xlu0 0
    %645 = vperm.xlu0 %644, %v627
    %v646 = vpop.permute.xlu0 %645
    %v648 = vmul.f32 %v619, %v631
    %v649 = vmul.f32 %v620, %v636
    %v650 = vmul.f32 %v621, %v641
    %v651 = vmul.f32 %v622, %v646
    %s652 = scalar_lea.vmem %s6, 32
    %v653 = vld [vmem:[%s652] sm:$0xff]
    %v654 = vld [vmem:[%s652 + $0x8] sm:$0xff]
    %v655 = vld [vmem:[%s652 + $0x10] sm:$0xff]
    %v656 = vld [vmem:[%s652 + $0x18] sm:$0xff]
    %658 = vset.pattern.permute.xlu0 0
    %659 = vperm.xlu0 %658, %v653
    %v660 = vpop.permute.xlu0 %659
    %663 = vset.pattern.permute.xlu0 0
    %664 = vperm.xlu0 %663, %v654
    %v665 = vpop.permute.xlu0 %664
    %668 = vset.pattern.permute.xlu0 0
    %669 = vperm.xlu0 %668, %v655
    %v670 = vpop.permute.xlu0 %669
    %673 = vset.pattern.permute.xlu0 0
    %674 = vperm.xlu0 %673, %v656
    %v675 = vpop.permute.xlu0 %674
    %v677 = vadd.f32 %v648, %v660
    %v678 = vadd.f32 %v649, %v665
    %v679 = vadd.f32 %v650, %v670
    %v680 = vadd.f32 %v651, %v675
    %v681 = vmul.f32 %v677, 0.01
    %v682 = vmul.f32 %v678, 0.01
    %v683 = vmul.f32 %v679, 0.01
    %v684 = vmul.f32 %v680, 0.01
    %v685 = vmax.f32 %v677, %v681
    %v686 = vmax.f32 %v678, %v682
    %v687 = vmax.f32 %v679, %v683
    %v688 = vmax.f32 %v680, %v684
    %v689 = vld [vmem:[%s7] sm:$0xff]
    %v690 = vld [vmem:[%s7 + $0x8] sm:$0xff]
    %v691 = vld [vmem:[%s7 + $0x10] sm:$0xff]
    %v692 = vld [vmem:[%s7 + $0x18] sm:$0xff]
    %694 = vset.pattern.permute.xlu0 0
    %695 = vperm.xlu0 %694, %v689
    %v696 = vpop.permute.xlu0 %695
    %699 = vset.pattern.permute.xlu0 0
    %700 = vperm.xlu0 %699, %v690
    %v701 = vpop.permute.xlu0 %700
    %704 = vset.pattern.permute.xlu0 0
    %705 = vperm.xlu0 %704, %v691
    %v706 = vpop.permute.xlu0 %705
    %709 = vset.pattern.permute.xlu0 0
    %710 = vperm.xlu0 %709, %v692
    %v711 = vpop.permute.xlu0 %710
    %v713 = vmul.f32 %v685, %v696
    %v714 = vmul.f32 %v686, %v701
    %v715 = vmul.f32 %v687, %v706
    %v716 = vmul.f32 %v688, %v711
    %v717 = vadd.f32 %v713, %v714
    %v718 = vadd.f32 %v717, %v715
    %v719 = vadd.f32 %v718, %v716
    %v720 = vrot.slane %v719, 4
    %v721 = vadd.f32 %v719, %v720
    %v722 = vrot.slane %v721, 2
    %v723 = vadd.f32 %v721, %v722
    %v724 = vrot.slane %v723, 1
    %v725 = vadd.f32 %v723, %v724
    %v726 = vld [vmem:[#allocation2] sm:$0x1]
    %728 = vset.pattern.permute.xlu0 0
    %729 = vperm.xlu0 %728, %v726
    %v730 = vpop.permute.xlu0 %729
    %v732 = vlaneseq
    %v733 = vshrl.u32 %v732, 7
    %v734 = vsub.s32 0, %v733
    %v735 = vrot.slane %v730, %v734
    %v736 = vadd.f32 %v725, %v735
    %v737 = vxor.u32 %v736, 2147483648
    %v738 = vmul.f32 %v737, 1.442695
    %v739 = vpow.pop %v738
    %v740 = vadd.f32 %v739, 1.0
    %v741 = vrcp.pop %v740
    %v742 = vmul.f32 1.0, %v741
    %743 = vst [vmem:[#allocation3] sm:$0x1] %v742
    // Predicated region
    $region38: #{tpu_custom_call.1} parent=1 // pred_check
      _
    $region39: #{tpu_custom_call.1} parent=1 // pred_check_branch
      %745 = sbr.rel (0) target = $region41
    $region40: #{tpu_custom_call.1} parent=1 // pred_region
      %s747 = ssub.s32 16, 16
      %748 = vsyncadd [#allocation4], %s747
      %s750 = sshll.u32 [#allocation3], 4
      %s751 = int_to_ptr.vmem [resolvable:$true] %s750
      %753 = dma.vmem_to_hbm [thread:$0]  %s751, 16, %s9, [#allocation4]
    $region41: #{tpu_custom_call.1} parent=1 // pred_fallthru
      _
    // Predicated region
    $region42: #{tpu_custom_call.1} parent=1 // pred_check
      _
    $region43: #{tpu_custom_call.1} parent=1 // pred_check_branch
      %755 = sbr.rel (0) target = $region45
    $region44: #{tpu_custom_call.1} parent=1 // pred_region
      %756 = dma.done [#allocation4], 16
    $region45: #{tpu_custom_call.1} parent=1 // pred_fallthru
      _
    %757 = vsyncpa [#allocation4], 1

</llo_original>
